<compile_context>
chip_gen: v7x
topology: tpu7x:2x2x1
jax: 0.10.0
libtpu: 0.0.40
codegen_flags: <defaults>
</compile_context>

<pallas_src>
import numpy as np
import jax
import jax.numpy as jnp
from jax import lax
from jax.experimental import pallas as pl
from jax.experimental.pallas import tpu as pltpu


# ----------------------------- Pallas kernel --------------------------------
def _attention_kernel(x_ref, m_ref, w_ref, bw_ref, v_ref, z_ref, a_ref):
    # x_ref : [Bb, T, H]  inputs for this batch block
    # m_ref : [Bb, T]     mask (0/1), lane-dense
    # w_ref : [H, H]      W weight, pre-transposed so x @ w == Linear(W)(x)
    # bw_ref: [1, H]      W bias
    # v_ref : [1, H]      v weight row (Linear(H, 1) weight)
    # z_ref : [Bb, T, H]  output z = inputs * a
    # a_ref : [Bb, T]     output attention weights (lane-dense)
    Bb, T, H = x_ref.shape
    x = x_ref[...]                                                  # [Bb, T, H]

    # W(inputs) + tanh: one (Bb*T, H) x (H, H) MXU matmul over the whole block.
    x2 = x.reshape(Bb * T, H)
    h = jnp.tanh(
        jnp.dot(x2, w_ref[...],
                preferred_element_type=jnp.float32,
                precision=lax.Precision.HIGHEST)
        + bw_ref[...])                                              # [Bb*T, H]

    # v(.): output width 1 -> VPU multiply + lane reduction (no degenerate
    # N=1 matmul), producing lane-dense [Bb, T] logits.  v bias dropped: it
    # cancels exactly in the normalization below.
    logits = jnp.sum(h.reshape(Bb, T, H) * v_ref[...].reshape(1, 1, H),
                     axis=-1)                                       # [Bb, T]

    m = m_ref[...]                                                  # [Bb, T]
    # Per-sequence max subtraction is mathematically a no-op after the
    # normalization but keeps exp() bounded.
    lmax = jnp.max(logits, axis=-1, keepdims=True)                  # [Bb, 1]
    u = jnp.exp(logits - lmax) * m                                  # [Bb, T]
    s = jnp.sum(u, axis=-1, keepdims=True)                          # [Bb, 1]
    # NOTE: all-zero mask rows give s == 0 -> NaN, matching the PyTorch module.
    a = u * (1.0 / s)                                               # [Bb, T]

    a_ref[...] = a.astype(a_ref.dtype)
    z_ref[...] = (x * a[:, :, None]).astype(z_ref.dtype)            # [Bb, T, H]


# ------------------------------ JAX wrapper ----------------------------------
def _choose_batch_block(B, T, H, bytes_per_el=4, vmem_budget=32 * 1024 * 1024):
    """Pick how many batch elements to process per grid step."""
    # Fill the MXU rows: aim for Bb*T >= 256 (covers v5e's 128 as well).
    bb_mxu = max(1, -(-256 // T))
    # VMEM per batch element per buffer: x + z ([T, H]) + mask + a ([T]), f32.
    per_b = (2 * T * H + 2 * T) * bytes_per_el
    # Keep the (double-buffered) blocks within a conservative budget (v7x: 64 MiB VMEM).
    bb_vmem = max(1, vmem_budget // (2 * per_b))
    return max(1, min(B, bb_mxu, bb_vmem))


def attention_forward(params, inputs, mask):
    """inputs: [B, T, H] float; mask: [B, T] 0/1.  Returns (z [B,T,H], a [B,T])."""
    inputs = jnp.asarray(inputs, jnp.float32)
    mask = jnp.asarray(mask, jnp.float32)
    B, T, H = inputs.shape

    w_t = jnp.transpose(jnp.asarray(params["W_w"], jnp.float32))   # [H, H]
    b_w = jnp.asarray(params["W_b"], jnp.float32).reshape(1, H)    # [1, H]
    v_row = jnp.asarray(params["v_w"], jnp.float32).reshape(1, H)  # [1, H]
    # params["v_b"] is intentionally unused: it cancels in a = u / sum(u).

    # Batch blocking (with padding so the grid tiles B exactly).
    Bb = _choose_batch_block(B, T, H)
    n_blocks = pl.cdiv(B, Bb)
    if n_blocks > 1 and Bb % 8 != 0:
        # Keep the (Bb, T) mask/a blocks sublane-aligned when Bb != full dim.
        Bb = ((Bb + 7) // 8) * 8
        n_blocks = pl.cdiv(B, Bb)
    B_pad = n_blocks * Bb
    if B_pad != B:
        pad = B_pad - B
        inputs_p = jnp.pad(inputs, ((0, pad), (0, 0), (0, 0)))
        # Pad mask rows with ones so padded sequences do not produce 0/0 NaNs.
        mask_p = jnp.pad(mask, ((0, pad), (0, 0)), constant_values=1.0)
    else:
        inputs_p, mask_p = inputs, mask

    # VMEM limit from actual block bytes (double-buffered x/z dominate),
    # clamped to stay within v7x's 64 MiB while allowing big v5e/v6e blocks.
    blk_bytes = Bb * T * (2 * H + 2) * 4
    weight_bytes = (H * H + 2 * H) * 4
    vmem_limit = int(min(max(4 * blk_bytes + 2 * weight_bytes,
                             16 * 1024 * 1024), 64 * 1024 * 1024))

    z, a = pl.pallas_call(
        _attention_kernel,
        out_shape=(jax.ShapeDtypeStruct((B_pad, T, H), jnp.float32),
                   jax.ShapeDtypeStruct((B_pad, T), jnp.float32)),
        grid=(n_blocks,),
        in_specs=[
            pl.BlockSpec((Bb, T, H), lambda b: (b, 0, 0)),   # inputs
            pl.BlockSpec((Bb, T), lambda b: (b, 0)),         # mask (lane-dense)
            pl.BlockSpec((H, H), lambda b: (0, 0)),          # W^T   (resident)
            pl.BlockSpec((1, H), lambda b: (0, 0)),          # b_W   (resident)
            pl.BlockSpec((1, H), lambda b: (0, 0)),          # v row (resident)
        ],
        out_specs=(
            pl.BlockSpec((Bb, T, H), lambda b: (b, 0, 0)),   # z
            pl.BlockSpec((Bb, T), lambda b: (b, 0)),         # a (lane-dense)
        ),
        compiler_params=pltpu.CompilerParams(
            dimension_semantics=("parallel",),
            vmem_limit_bytes=vmem_limit),
    )(inputs_p, mask_p, w_t, b_w, v_row)

    if B_pad != B:
        z = z[:B]
        a = a[:B]
    return z, a


# -------------------- pure-numpy reference (for validation) ------------------
def reference_attention(params, inputs, mask):
    x = np.asarray(inputs, np.float32)
    m = np.asarray(mask, np.float32)
    W = np.asarray(params["W_w"]); bW = np.asarray(params["W_b"])
    v = np.asarray(params["v_w"]); bv = np.asarray(params["v_b"])
    u = np.tanh(x @ W.T + bW) @ v.T + bv          # [B, T, 1]
    u = np.exp(u)
    u = m[:, :, None] * u
    sums = np.sum(u, axis=1, keepdims=True)
    a = u / sums
    z = x * a
    return z, a.reshape(x.shape[0], x.shape[1])


# --------------------------------- main --------------------------------------
if __name__ == "__main__":
    key = jax.random.PRNGKey(0)
    B, T, H = 2, 8, 32                            # batch, seq, hidden_size
    k1, k2, k3, k4, k5 = jax.random.split(key, 5)

    bound = 1.0 / float(np.sqrt(H))               # nn.Linear default init range
    params = {
        "W_w": jax.random.uniform(k1, (H, H), jnp.float32, -bound, bound),
        "W_b": jax.random.uniform(k2, (H,), jnp.float32, -bound, bound),
        "v_w": jax.random.uniform(k3, (1, H), jnp.float32, -bound, bound),
        "v_b": jax.random.uniform(k4, (1,), jnp.float32, -bound, bound),
    }
    inputs = jax.random.normal(k5, (B, T, H), jnp.float32)
    lengths = np.array([8, 5], np.int32)          # variable-length sequences
    mask = jnp.asarray((np.arange(T)[None, :] < lengths[:, None]).astype(np.float32))

    fwd = jax.jit(attention_forward)
    z, a = fwd(params, inputs, mask)
    z, a = jax.block_until_ready((z, a))

    z_ref, a_ref = reference_attention(params, np.asarray(inputs), np.asarray(mask))
    assert z.shape == z_ref.shape and a.shape == a_ref.shape, (z.shape, a.shape)
    np.testing.assert_allclose(np.asarray(z), z_ref, atol=1e-5, rtol=1e-4)
    np.testing.assert_allclose(np.asarray(a), a_ref, atol=1e-5, rtol=1e-4)

    print("KERNEL_OK")
</pallas_src>

<mosaic_0001>
module attributes {stable_mosaic.version = 11 : i64} {
  func.func @_attention_kernel(%arg0: i32, %arg1: memref<2x8x32xf32, #tpu.memory_space<vmem>>, %arg2: memref<2x8xf32, #tpu.memory_space<vmem>>, %arg3: memref<32x32xf32, #tpu.memory_space<vmem>>, %arg4: memref<1x32xf32, #tpu.memory_space<vmem>>, %arg5: memref<1x32xf32, #tpu.memory_space<vmem>>, %arg6: memref<2x8x32xf32, #tpu.memory_space<vmem>>, %arg7: memref<2x8xf32, #tpu.memory_space<vmem>>) attributes {dimension_semantics = [#tpu.dimension_semantics<parallel>], iteration_bounds = array<i64: 1>, scalar_prefetch = 0 : i64, scratch_operands = 0 : i64, tpu.core_type = #tpu.core_type<tc>, window_params = [{transform_indices = @transform_0, window_bounds = array<i64: 2, 8, 32>}, {transform_indices = @transform_1, window_bounds = array<i64: 2, 8>}, {pipeline_mode = #tpu.pipeline_mode<synchronous>, transform_indices = @transform_2, window_bounds = array<i64: 32, 32>}, {pipeline_mode = #tpu.pipeline_mode<synchronous>, transform_indices = @transform_3, window_bounds = array<i64: 1, 32>}, {pipeline_mode = #tpu.pipeline_mode<synchronous>, transform_indices = @transform_4, window_bounds = array<i64: 1, 32>}, {transform_indices = @transform_5, window_bounds = array<i64: 2, 8, 32>}, {transform_indices = @transform_6, window_bounds = array<i64: 2, 8>}]} {
    %c0 = arith.constant 0 : index
    %c0_0 = arith.constant 0 : index
    %c0_1 = arith.constant 0 : index
    %0 = vector.load %arg1[%c0, %c0_0, %c0_1] : memref<2x8x32xf32, #tpu.memory_space<vmem>>, vector<2x8x32xf32>
    %1 = vector.shape_cast %0 : vector<2x8x32xf32> to vector<16x32xf32>
    %c0_2 = arith.constant 0 : index
    %c0_3 = arith.constant 0 : index
    %2 = vector.load %arg3[%c0_2, %c0_3] : memref<32x32xf32, #tpu.memory_space<vmem>>, vector<32x32xf32>
    %cst = arith.constant dense<0.000000e+00> : vector<16x32xf32>
    %3 = tpu.matmul %1, %2, %cst {dimension_numbers = #tpu.dot_dimension_numbers<[1], [0], [0], [1], [0, 0, 1, 1], [], []>, precision = #tpu.contract_precision<fp32>} : vector<16x32xf32>, vector<32x32xf32>, vector<16x32xf32> -> vector<16x32xf32>
    %c0_4 = arith.constant 0 : index
    %c0_5 = arith.constant 0 : index
    %4 = vector.load %arg4[%c0_4, %c0_5] : memref<1x32xf32, #tpu.memory_space<vmem>>, vector<1x32xf32>
    %5 = vector.broadcast %4 : vector<1x32xf32> to vector<16x32xf32>
    %6 = arith.addf %3, %5 : vector<16x32xf32>
    %7 = math.tanh %6 : vector<16x32xf32>
    %8 = vector.shape_cast %7 : vector<16x32xf32> to vector<2x8x32xf32>
    %c0_6 = arith.constant 0 : index
    %c0_7 = arith.constant 0 : index
    %9 = vector.load %arg5[%c0_6, %c0_7] : memref<1x32xf32, #tpu.memory_space<vmem>>, vector<1x32xf32>
    %10 = vector.shape_cast %9 : vector<1x32xf32> to vector<1x1x32xf32>
    %11 = vector.broadcast %10 : vector<1x1x32xf32> to vector<2x8x32xf32>
    %12 = arith.mulf %8, %11 : vector<2x8x32xf32>
    %cst_8 = arith.constant dense<0.000000e+00> : vector<2x8xf32>
    %13 = vector.multi_reduction <add>, %12, %cst_8 [2] : vector<2x8x32xf32> to vector<2x8xf32>
    %c0_9 = arith.constant 0 : index
    %c0_10 = arith.constant 0 : index
    %14 = vector.load %arg2[%c0_9, %c0_10] : memref<2x8xf32, #tpu.memory_space<vmem>>, vector<2x8xf32>
    %cst_11 = arith.constant dense<0xFF800000> : vector<2xf32>
    %15 = vector.multi_reduction <maximumf>, %13, %cst_11 [1] : vector<2x8xf32> to vector<2xf32>
    %16 = vector.shape_cast %15 : vector<2xf32> to vector<2x1xf32>
    %17 = vector.broadcast %16 : vector<2x1xf32> to vector<2x8xf32>
    %18 = arith.subf %13, %17 : vector<2x8xf32>
    %19 = math.exp %18 : vector<2x8xf32>
    %20 = arith.mulf %19, %14 : vector<2x8xf32>
    %cst_12 = arith.constant dense<0.000000e+00> : vector<2xf32>
    %21 = vector.multi_reduction <add>, %20, %cst_12 [1] : vector<2x8xf32> to vector<2xf32>
    %22 = vector.shape_cast %21 : vector<2xf32> to vector<2x1xf32>
    %cst_13 = arith.constant 1.000000e+00 : f32
    %23 = vector.broadcast %cst_13 : f32 to vector<2x1xf32>
    %24 = arith.divf %23, %22 : vector<2x1xf32>
    %25 = vector.broadcast %24 : vector<2x1xf32> to vector<2x8xf32>
    %26 = arith.mulf %20, %25 : vector<2x8xf32>
    %c0_14 = arith.constant 0 : index
    %c0_15 = arith.constant 0 : index
    %27 = vector.load %arg7[%c0_14, %c0_15] : memref<2x8xf32, #tpu.memory_space<vmem>>, vector<2x8xf32>
    tpu.vector_store %arg7[%c0_14, %c0_15], %26 {strides = array<i32>} : memref<2x8xf32, #tpu.memory_space<vmem>>, vector<2x8xf32>,
    %28 = vector.shape_cast %26 : vector<2x8xf32> to vector<2x8x1xf32>
    %29 = vector.broadcast %28 : vector<2x8x1xf32> to vector<2x8x32xf32>
    %30 = arith.mulf %0, %29 : vector<2x8x32xf32>
    %c0_16 = arith.constant 0 : index
    %c0_17 = arith.constant 0 : index
    %c0_18 = arith.constant 0 : index
    %31 = vector.load %arg6[%c0_16, %c0_17, %c0_18] : memref<2x8x32xf32, #tpu.memory_space<vmem>>, vector<2x8x32xf32>
    tpu.vector_store %arg6[%c0_16, %c0_17, %c0_18], %30 {strides = array<i32>} : memref<2x8x32xf32, #tpu.memory_space<vmem>>, vector<2x8x32xf32>,
    return
  }
  func.func @transform_0(%arg0: i32) -> (i32, i32, i32) {
    %c0_i32 = arith.constant 0 : i32
    %c0_i32_0 = arith.constant 0 : i32
    %c0_i32_1 = arith.constant 0 : i32
    return %arg0, %c0_i32, %c0_i32_0 : i32, i32, i32
  }
  func.func @transform_1(%arg0: i32) -> (i32, i32) {
    %c0_i32 = arith.constant 0 : i32
    %c0_i32_0 = arith.constant 0 : i32
    return %arg0, %c0_i32 : i32, i32
  }
  func.func @transform_2(%arg0: i32) -> (i32, i32) {
    %c0_i32 = arith.constant 0 : i32
    %c0_i32_0 = arith.constant 0 : i32
    %c0_i32_1 = arith.constant 0 : i32
    return %c0_i32, %c0_i32_0 : i32, i32
  }
  func.func @transform_3(%arg0: i32) -> (i32, i32) {
    %c0_i32 = arith.constant 0 : i32
    %c0_i32_0 = arith.constant 0 : i32
    %c0_i32_1 = arith.constant 0 : i32
    return %c0_i32, %c0_i32_0 : i32, i32
  }
  func.func @transform_4(%arg0: i32) -> (i32, i32) {
    %c0_i32 = arith.constant 0 : i32
    %c0_i32_0 = arith.constant 0 : i32
    %c0_i32_1 = arith.constant 0 : i32
    return %c0_i32, %c0_i32_0 : i32, i32
  }
  func.func @transform_5(%arg0: i32) -> (i32, i32, i32) {
    %c0_i32 = arith.constant 0 : i32
    %c0_i32_0 = arith.constant 0 : i32
    %c0_i32_1 = arith.constant 0 : i32
    return %arg0, %c0_i32, %c0_i32_0 : i32, i32, i32
  }
  func.func @transform_6(%arg0: i32) -> (i32, i32) {
    %c0_i32 = arith.constant 0 : i32
    %c0_i32_0 = arith.constant 0 : i32
    return %arg0, %c0_i32 : i32, i32
  }
}

</mosaic_0001>

<llo_original>
// kernel: attention_forward.1
$region0: #{attention_forward.1}
  #allocation0 [shape = 'u32[]', space=smem, size = 0x4, offset = 0x4, fixed_abs, tag = 'smem constant byte address 0x4 - core index']
  #allocation1 [shape = 'u32[144,128]{1,0:T(1,128)}', space=vmem, size = 0x12000, scoped, tag = 'internal scratch']
  %s0 = inlined_call_operand.vmem [shape: f32[2,8,32], index: 0, kind: input, shape index: {}]
  %s1 = inlined_call_operand.vmem [shape: f32[2,8], index: 1, kind: input, shape index: {}]
  %s2 = inlined_call_operand.vmem [shape: f32[32,32], index: 2, kind: input, shape index: {}]
  %s3 = inlined_call_operand.vmem [shape: f32[1,32], index: 3, kind: input, shape index: {}]
  %s4 = inlined_call_operand.vmem [shape: f32[1,32], index: 4, kind: input, shape index: {}]
  %s5 = inlined_call_operand.hbm [shape: f32[2,8,32], index: 5, kind: output, shape index: {0}]
  %s6 = inlined_call_operand.hbm [shape: f32[2,8], index: 6, kind: output, shape index: {1}]
  %7 = xla_tuple %s5, %s6
  %s8 = sld [smem:[#allocation0]]
  $region38: #{attention_forward.1} parent=0
    _
  %s10 = ssub.s32 1, %s8
  %s11 = scalar_select 0, %s10, %s8
  $region1: #{attention_forward.1} parent=0
    #allocation2 [shape = 'u8[8192]{0}', space=vmem, size = 0x2000, scoped, tag = 'output window, operand 0, single buffered']
    #allocation3 [shape = 's32[1]{0}', space=sflag, size = 0x4, scoped, tag = 'scoped memory for attention_forward.1']
    #allocation4 [shape = 'u8[1024]{0}', space=vmem, size = 0x400, scoped, tag = 'output window, operand 1, single buffered']
    #allocation5 [shape = 's32[1]{0}', space=sflag, size = 0x4, scoped, tag = 'scoped memory for attention_forward.1']
    %12 = vsyncpa [#allocation3], 0
    %13 = vsyncpa [#allocation5], 0
    // Predicated region
    $region2: #{attention_forward.1} parent=1 // pred_check
      _
    $region3: #{attention_forward.1} parent=1 // pred_check_branch
      %15 = sbr.rel (0) target = $region5
    $region4: #{attention_forward.1} parent=1 // pred_region
      _
    $region5: #{attention_forward.1} parent=1 // pred_fallthru
      _
    // Predicated region
    $region6: #{attention_forward.1} parent=1 // pred_check
      _
    $region7: #{attention_forward.1} parent=1 // pred_check_branch
      %17 = sbr.rel (0) target = $region9
    $region8: #{attention_forward.1} parent=1 // pred_region
      _
    $region9: #{attention_forward.1} parent=1 // pred_fallthru
      _
    // Predicated region
    $region10: #{attention_forward.1} parent=1 // pred_check
      _
    $region11: #{attention_forward.1} parent=1 // pred_check_branch
      %19 = sbr.rel (0) target = $region13
    $region12: #{attention_forward.1} parent=1 // pred_region
      _
    $region13: #{attention_forward.1} parent=1 // pred_fallthru
      _
    // Predicated region
    $region14: #{attention_forward.1} parent=1 // pred_check
      _
    $region15: #{attention_forward.1} parent=1 // pred_check_branch
      %21 = sbr.rel (0) target = $region17
    $region16: #{attention_forward.1} parent=1 // pred_region
      _
    $region17: #{attention_forward.1} parent=1 // pred_fallthru
      _
    // Predicated region
    $region18: #{attention_forward.1} parent=1 // pred_check
      _
    $region19: #{attention_forward.1} parent=1 // pred_check_branch
      %23 = sbr.rel (0) target = $region21
    $region20: #{attention_forward.1} parent=1 // pred_region
      _
    $region21: #{attention_forward.1} parent=1 // pred_fallthru
      _
    %v24 = vld [vmem:[%s0] sm:$0xff]
    %v25 = vld [vmem:[%s0 + $0x8] sm:$0xff]
    %v26 = vld [vmem:[%s2] sm:$0xff]
    %v27 = vld [vmem:[%s2 + $0x8] sm:$0xff]
    %v28 = vld [vmem:[%s2 + $0x10] sm:$0xff]
    %v29 = vld [vmem:[%s2 + $0x18] sm:$0xff]
    %v30 = vld [vmem:[%s3] sm:$0x1]
    %v32 = vlaneseq
    %v33 = vshrl.u32 %v32, 7
    %v34 = vsub.s32 0, %v33
    %v35 = vrot.slane %v30, %v34
    %vm37 = vcmask 261120
    %v39 = vsel %vm37, %v24, 0
    %v42 = vsel %vm37, %v25, 0
    %44 = vmatprep.subr.mxu0 0.0
    %v45 = vand.u32 %v26, 4294901760
    %46 = vmatpush1.msra.mxu0 %v45
    %47 = vmatprep.subr.mxu0 0.0
    %v48 = vand.u32 %v27, 4294901760
    %49 = vmatpush1.msra.mxu0 %v48
    %50 = vmatprep.subr.mxu0 0.0
    %v51 = vand.u32 %v28, 4294901760
    %52 = vmatpush1.msra.mxu0 %v51
    %53 = vmatprep.subr.mxu0 0.0
    %v54 = vand.u32 %v29, 4294901760
    %55 = vmatpush1.msra.mxu0 %v54
    %56 = vmatprep.subr.mxu0 0.0
    %57 = vmatpush1.msra.mxu0 0.0
    %58 = vmatprep.subr.mxu0 0.0
    %59 = vmatpush1.msra.mxu0 0.0
    %60 = vmatprep.subr.mxu0 0.0
    %61 = vmatpush1.msra.mxu0 0.0
    %62 = vmatprep.subr.mxu0 0.0
    %63 = vmatpush1.msra.mxu0 0.0
    %64 = vmatprep.subr.mxu0 0.0
    %65 = vmatpush1.msra.mxu0 0.0
    %66 = vmatprep.subr.mxu0 0.0
    %67 = vmatpush1.msra.mxu0 0.0
    %68 = vmatprep.subr.mxu0 0.0
    %69 = vmatpush1.msra.mxu0 0.0
    %70 = vmatprep.subr.mxu0 0.0
    %71 = vmatpush1.msra.mxu0 0.0
    %72 = vmatprep.subr.mxu0 0.0
    %73 = vmatpush1.msra.mxu0 0.0
    %74 = vmatprep.subr.mxu0 0.0
    %75 = vmatpush1.msra.mxu0 0.0
    %76 = vmatprep.subr.mxu0 0.0
    %77 = vmatpush1.msra.mxu0 0.0
    %78 = vmatprep.subr.mxu0 0.0
    %79 = vmatpush1.msra.mxu0 0.0
    %80 = vmatprep.subr.mxu0 0.0
    %81 = vmatpush1.msra.mxu0 0.0
    %82 = vmatprep.subr.mxu0 0.0
    %83 = vmatpush1.msra.mxu0 0.0
    %84 = vmatprep.subr.mxu0 0.0
    %85 = vmatpush1.msra.mxu0 0.0
    %86 = vmatprep.subr.mxu0 0.0
    %87 = vmatpush1.msra.mxu0 0.0
    %88 = vmatprep.subr.mxu0 0.0
    %89 = vmatpush1.msra.mxu0 0.0
    %90 = vmatprep.subr.mxu0 0.0
    %91 = vmatpush1.msra.mxu0 0.0
    %92 = vmatprep.subr.mxu0 0.0
    %93 = vmatpush1.msra.mxu0 0.0
    %94 = vmatprep.subr.mxu0 0.0
    %95 = vmatpush1.msra.mxu0 0.0
    %96 = vmatprep.subr.mxu0 0.0
    %97 = vmatpush1.msra.mxu0 0.0
    %98 = vmatprep.subr.mxu0 0.0
    %99 = vmatpush1.msra.mxu0 0.0
    %100 = vmatprep.subr.mxu0 0.0
    %101 = vmatpush1.msra.mxu0 0.0
    %102 = vmatprep.subr.mxu0 0.0
    %103 = vmatpush1.msra.mxu0 0.0
    %104 = vmatprep.subr.mxu0 0.0
    %105 = vmatpush1.msra.mxu0 0.0
    %106 = vmatprep.subr.mxu0 0.0
    %107 = vmatpush1.msra.mxu0 0.0
    %108 = vmatprep.subr.mxu0 0.0
    %109 = vmatpush1.msra.mxu0 0.0
    %110 = vmatprep.subr.mxu0 0.0
    %111 = vmatpush1.msra.mxu0 0.0
    %112 = vmatprep.mubr.f32.mxu0 0.0
    %v113 = vand.u32 %v39, 4294901760
    %v114 = vsub.f32 %v39, %v113
    %v115 = vand.u32 %v114, 4294901760
    %v116 = vsub.f32 %v114, %v115
    %v117 = vand.u32 %v116, 4294901760
    %118 = vmatmul.mubr.f32.gmra.mrb[0].mxu0 %v117
    %v119 = vpop.f32.mrb[0].mxu0
    %v120 = vadd.f32 %v35, %v119
    %v121 = vpop.f32.mrb[0].mxu0
    %122 = vmatprep.mubr.f32.mxu0 0.0
    %v123 = vand.u32 %v42, 4294901760
    %v124 = vsub.f32 %v42, %v123
    %v125 = vand.u32 %v124, 4294901760
    %v126 = vsub.f32 %v124, %v125
    %v127 = vand.u32 %v126, 4294901760
    %128 = vmatmul.mubr.f32.gmra.mrb[0].mxu0 %v127
    %v129 = vpop.f32.mrb[0].mxu0
    %v130 = vadd.f32 %v35, %v129
    %v131 = vpop.f32.mrb[0].mxu0
    %132 = vdwg.mxu0
    %133 = vmatprep.subr.mxu0 0.0
    %v134 = vand.u32 %v26, 4294901760
    %v135 = vsub.f32 %v26, %v134
    %v136 = vand.u32 %v135, 4294901760
    %v137 = vsub.f32 %v135, %v136
    %v138 = vand.u32 %v137, 4294901760
    %139 = vmatpush1.msra.mxu0 %v138
    %140 = vmatprep.subr.mxu0 0.0
    %v141 = vand.u32 %v27, 4294901760
    %v142 = vsub.f32 %v27, %v141
    %v143 = vand.u32 %v142, 4294901760
    %v144 = vsub.f32 %v142, %v143
    %v145 = vand.u32 %v144, 4294901760
    %146 = vmatpush1.msra.mxu0 %v145
    %147 = vmatprep.subr.mxu0 0.0
    %v148 = vand.u32 %v28, 4294901760
    %v149 = vsub.f32 %v28, %v148
    %v150 = vand.u32 %v149, 4294901760
    %v151 = vsub.f32 %v149, %v150
    %v152 = vand.u32 %v151, 4294901760
    %153 = vmatpush1.msra.mxu0 %v152
    %154 = vmatprep.subr.mxu0 0.0
    %v155 = vand.u32 %v29, 4294901760
    %v156 = vsub.f32 %v29, %v155
    %v157 = vand.u32 %v156, 4294901760
    %v158 = vsub.f32 %v156, %v157
    %v159 = vand.u32 %v158, 4294901760
    %160 = vmatpush1.msra.mxu0 %v159
    %161 = vmatprep.subr.mxu0 0.0
    %162 = vmatpush1.msra.mxu0 0.0
    %163 = vmatprep.subr.mxu0 0.0
    %164 = vmatpush1.msra.mxu0 0.0
    %165 = vmatprep.subr.mxu0 0.0
    %166 = vmatpush1.msra.mxu0 0.0
    %167 = vmatprep.subr.mxu0 0.0
    %168 = vmatpush1.msra.mxu0 0.0
    %169 = vmatprep.subr.mxu0 0.0
    %170 = vmatpush1.msra.mxu0 0.0
    %171 = vmatprep.subr.mxu0 0.0
    %172 = vmatpush1.msra.mxu0 0.0
    %173 = vmatprep.subr.mxu0 0.0
    %174 = vmatpush1.msra.mxu0 0.0
    %175 = vmatprep.subr.mxu0 0.0
    %176 = vmatpush1.msra.mxu0 0.0
    %177 = vmatprep.subr.mxu0 0.0
    %178 = vmatpush1.msra.mxu0 0.0
    %179 = vmatprep.subr.mxu0 0.0
    %180 = vmatpush1.msra.mxu0 0.0
    %181 = vmatprep.subr.mxu0 0.0
    %182 = vmatpush1.msra.mxu0 0.0
    %183 = vmatprep.subr.mxu0 0.0
    %184 = vmatpush1.msra.mxu0 0.0
    %185 = vmatprep.subr.mxu0 0.0
    %186 = vmatpush1.msra.mxu0 0.0
    %187 = vmatprep.subr.mxu0 0.0
    %188 = vmatpush1.msra.mxu0 0.0
    %189 = vmatprep.subr.mxu0 0.0
    %190 = vmatpush1.msra.mxu0 0.0
    %191 = vmatprep.subr.mxu0 0.0
    %192 = vmatpush1.msra.mxu0 0.0
    %193 = vmatprep.subr.mxu0 0.0
    %194 = vmatpush1.msra.mxu0 0.0
    %195 = vmatprep.subr.mxu0 0.0
    %196 = vmatpush1.msra.mxu0 0.0
    %197 = vmatprep.subr.mxu0 0.0
    %198 = vmatpush1.msra.mxu0 0.0
    %199 = vmatprep.subr.mxu0 0.0
    %200 = vmatpush1.msra.mxu0 0.0
    %201 = vmatprep.subr.mxu0 0.0
    %202 = vmatpush1.msra.mxu0 0.0
    %203 = vmatprep.subr.mxu0 0.0
    %204 = vmatpush1.msra.mxu0 0.0
    %205 = vmatprep.subr.mxu0 0.0
    %206 = vmatpush1.msra.mxu0 0.0
    %207 = vmatprep.subr.mxu0 0.0
    %208 = vmatpush1.msra.mxu0 0.0
    %209 = vmatprep.subr.mxu0 0.0
    %210 = vmatpush1.msra.mxu0 0.0
    %211 = vmatprep.subr.mxu0 0.0
    %212 = vmatpush1.msra.mxu0 0.0
    %213 = vmatprep.subr.mxu0 0.0
    %214 = vmatpush1.msra.mxu0 0.0
    %215 = vmatprep.subr.mxu0 0.0
    %216 = vmatpush1.msra.mxu0 0.0
    %217 = vmatprep.mubr.f32.mxu0 0.0
    %v218 = vand.u32 %v39, 4294901760
    %219 = vmatmul.mubr.f32.gmra.mrb[0].mxu0 %v218
    %v220 = vpop.f32.mrb[0].mxu0
    %v221 = vadd.f32 %v120, %v220
    %v222 = vpop.f32.mrb[0].mxu0
    %223 = vmatprep.mubr.f32.mxu0 0.0
    %v224 = vand.u32 %v42, 4294901760
    %225 = vmatmul.mubr.f32.gmra.mrb[0].mxu0 %v224
    %v226 = vpop.f32.mrb[0].mxu0
    %v227 = vadd.f32 %v130, %v226
    %v228 = vpop.f32.mrb[0].mxu0
    %229 = vdwg.mxu0
    %230 = vmatprep.subr.mxu0 0.0
    %v231 = vand.u32 %v26, 4294901760
    %v232 = vsub.f32 %v26, %v231
    %233 = vmatpush1.msra.mxu0 %v232
    %234 = vmatprep.subr.mxu0 0.0
    %v235 = vand.u32 %v27, 4294901760
    %v236 = vsub.f32 %v27, %v235
    %237 = vmatpush1.msra.mxu0 %v236
    %238 = vmatprep.subr.mxu0 0.0
    %v239 = vand.u32 %v28, 4294901760
    %v240 = vsub.f32 %v28, %v239
    %241 = vmatpush1.msra.mxu0 %v240
    %242 = vmatprep.subr.mxu0 0.0
    %v243 = vand.u32 %v29, 4294901760
    %v244 = vsub.f32 %v29, %v243
    %245 = vmatpush1.msra.mxu0 %v244
    %246 = vmatprep.subr.mxu0 0.0
    %247 = vmatpush1.msra.mxu0 0.0
    %248 = vmatprep.subr.mxu0 0.0
    %249 = vmatpush1.msra.mxu0 0.0
    %250 = vmatprep.subr.mxu0 0.0
    %251 = vmatpush1.msra.mxu0 0.0
    %252 = vmatprep.subr.mxu0 0.0
    %253 = vmatpush1.msra.mxu0 0.0
    %254 = vmatprep.subr.mxu0 0.0
    %255 = vmatpush1.msra.mxu0 0.0
    %256 = vmatprep.subr.mxu0 0.0
    %257 = vmatpush1.msra.mxu0 0.0
    %258 = vmatprep.subr.mxu0 0.0
    %259 = vmatpush1.msra.mxu0 0.0
    %260 = vmatprep.subr.mxu0 0.0
    %261 = vmatpush1.msra.mxu0 0.0
    %262 = vmatprep.subr.mxu0 0.0
    %263 = vmatpush1.msra.mxu0 0.0
    %264 = vmatprep.subr.mxu0 0.0
    %265 = vmatpush1.msra.mxu0 0.0
    %266 = vmatprep.subr.mxu0 0.0
    %267 = vmatpush1.msra.mxu0 0.0
    %268 = vmatprep.subr.mxu0 0.0
    %269 = vmatpush1.msra.mxu0 0.0
    %270 = vmatprep.subr.mxu0 0.0
    %271 = vmatpush1.msra.mxu0 0.0
    %272 = vmatprep.subr.mxu0 0.0
    %273 = vmatpush1.msra.mxu0 0.0
    %274 = vmatprep.subr.mxu0 0.0
    %275 = vmatpush1.msra.mxu0 0.0
    %276 = vmatprep.subr.mxu0 0.0
    %277 = vmatpush1.msra.mxu0 0.0
    %278 = vmatprep.subr.mxu0 0.0
    %279 = vmatpush1.msra.mxu0 0.0
    %280 = vmatprep.subr.mxu0 0.0
    %281 = vmatpush1.msra.mxu0 0.0
    %282 = vmatprep.subr.mxu0 0.0
    %283 = vmatpush1.msra.mxu0 0.0
    %284 = vmatprep.subr.mxu0 0.0
    %285 = vmatpush1.msra.mxu0 0.0
    %286 = vmatprep.subr.mxu0 0.0
    %287 = vmatpush1.msra.mxu0 0.0
    %288 = vmatprep.subr.mxu0 0.0
    %289 = vmatpush1.msra.mxu0 0.0
    %290 = vmatprep.subr.mxu0 0.0
    %291 = vmatpush1.msra.mxu0 0.0
    %292 = vmatprep.subr.mxu0 0.0
    %293 = vmatpush1.msra.mxu0 0.0
    %294 = vmatprep.subr.mxu0 0.0
    %295 = vmatpush1.msra.mxu0 0.0
    %296 = vmatprep.subr.mxu0 0.0
    %297 = vmatpush1.msra.mxu0 0.0
    %298 = vmatprep.subr.mxu0 0.0
    %299 = vmatpush1.msra.mxu0 0.0
    %300 = vmatprep.subr.mxu0 0.0
    %301 = vmatpush1.msra.mxu0 0.0
    %302 = vmatprep.mubr.f32.mxu0 0.0
    %v303 = vand.u32 %v39, 4294901760
    %v304 = vsub.f32 %v39, %v303
    %305 = vmatmul.mubr.f32.gmra.mrb[0].mxu0 %v304
    %v306 = vpop.f32.mrb[0].mxu0
    %v307 = vadd.f32 %v221, %v306
    %v308 = vpop.f32.mrb[0].mxu0
    %309 = vmatprep.mubr.f32.mxu0 0.0
    %v310 = vand.u32 %v42, 4294901760
    %v311 = vsub.f32 %v42, %v310
    %312 = vmatmul.mubr.f32.gmra.mrb[0].mxu0 %v311
    %v313 = vpop.f32.mrb[0].mxu0
    %v314 = vadd.f32 %v227, %v313
    %v315 = vpop.f32.mrb[0].mxu0
    %316 = vdwg.mxu0
    %317 = vmatprep.subr.mxu0 0.0
    %v318 = vand.u32 %v26, 4294901760
    %319 = vmatpush1.msra.mxu0 %v318
    %320 = vmatprep.subr.mxu0 0.0
    %v321 = vand.u32 %v27, 4294901760
    %322 = vmatpush1.msra.mxu0 %v321
    %323 = vmatprep.subr.mxu0 0.0
    %v324 = vand.u32 %v28, 4294901760
    %325 = vmatpush1.msra.mxu0 %v324
    %326 = vmatprep.subr.mxu0 0.0
    %v327 = vand.u32 %v29, 4294901760
    %328 = vmatpush1.msra.mxu0 %v327
    %329 = vmatprep.subr.mxu0 0.0
    %330 = vmatpush1.msra.mxu0 0.0
    %331 = vmatprep.subr.mxu0 0.0
    %332 = vmatpush1.msra.mxu0 0.0
    %333 = vmatprep.subr.mxu0 0.0
    %334 = vmatpush1.msra.mxu0 0.0
    %335 = vmatprep.subr.mxu0 0.0
    %336 = vmatpush1.msra.mxu0 0.0
    %337 = vmatprep.subr.mxu0 0.0
    %338 = vmatpush1.msra.mxu0 0.0
    %339 = vmatprep.subr.mxu0 0.0
    %340 = vmatpush1.msra.mxu0 0.0
    %341 = vmatprep.subr.mxu0 0.0
    %342 = vmatpush1.msra.mxu0 0.0
    %343 = vmatprep.subr.mxu0 0.0
    %344 = vmatpush1.msra.mxu0 0.0
    %345 = vmatprep.subr.mxu0 0.0
    %346 = vmatpush1.msra.mxu0 0.0
    %347 = vmatprep.subr.mxu0 0.0
    %348 = vmatpush1.msra.mxu0 0.0
    %349 = vmatprep.subr.mxu0 0.0
    %350 = vmatpush1.msra.mxu0 0.0
    %351 = vmatprep.subr.mxu0 0.0
    %352 = vmatpush1.msra.mxu0 0.0
    %353 = vmatprep.subr.mxu0 0.0
    %354 = vmatpush1.msra.mxu0 0.0
    %355 = vmatprep.subr.mxu0 0.0
    %356 = vmatpush1.msra.mxu0 0.0
    %357 = vmatprep.subr.mxu0 0.0
    %358 = vmatpush1.msra.mxu0 0.0
    %359 = vmatprep.subr.mxu0 0.0
    %360 = vmatpush1.msra.mxu0 0.0
    %361 = vmatprep.subr.mxu0 0.0
    %362 = vmatpush1.msra.mxu0 0.0
    %363 = vmatprep.subr.mxu0 0.0
    %364 = vmatpush1.msra.mxu0 0.0
    %365 = vmatprep.subr.mxu0 0.0
    %366 = vmatpush1.msra.mxu0 0.0
    %367 = vmatprep.subr.mxu0 0.0
    %368 = vmatpush1.msra.mxu0 0.0
    %369 = vmatprep.subr.mxu0 0.0
    %370 = vmatpush1.msra.mxu0 0.0
    %371 = vmatprep.subr.mxu0 0.0
    %372 = vmatpush1.msra.mxu0 0.0
    %373 = vmatprep.subr.mxu0 0.0
    %374 = vmatpush1.msra.mxu0 0.0
    %375 = vmatprep.subr.mxu0 0.0
    %376 = vmatpush1.msra.mxu0 0.0
    %377 = vmatprep.subr.mxu0 0.0
    %378 = vmatpush1.msra.mxu0 0.0
    %379 = vmatprep.subr.mxu0 0.0
    %380 = vmatpush1.msra.mxu0 0.0
    %381 = vmatprep.subr.mxu0 0.0
    %382 = vmatpush1.msra.mxu0 0.0
    %383 = vmatprep.subr.mxu0 0.0
    %384 = vmatpush1.msra.mxu0 0.0
    %385 = vmatprep.mubr.f32.mxu0 0.0
    %v386 = vand.u32 %v39, 4294901760
    %v387 = vsub.f32 %v39, %v386
    %v388 = vand.u32 %v387, 4294901760
    %389 = vmatmul.mubr.f32.gmra.mrb[0].mxu0 %v388
    %v390 = vpop.f32.mrb[0].mxu0
    %v391 = vadd.f32 %v307, %v390
    %v392 = vpop.f32.mrb[0].mxu0
    %393 = vmatprep.mubr.f32.mxu0 0.0
    %v394 = vand.u32 %v42, 4294901760
    %v395 = vsub.f32 %v42, %v394
    %v396 = vand.u32 %v395, 4294901760
    %397 = vmatmul.mubr.f32.gmra.mrb[0].mxu0 %v396
    %v398 = vpop.f32.mrb[0].mxu0
    %v399 = vadd.f32 %v314, %v398
    %v400 = vpop.f32.mrb[0].mxu0
    %401 = vdwg.mxu0
    %402 = vmatprep.subr.mxu0 0.0
    %v403 = vand.u32 %v26, 4294901760
    %v404 = vsub.f32 %v26, %v403
    %v405 = vand.u32 %v404, 4294901760
    %406 = vmatpush1.msra.mxu0 %v405
    %407 = vmatprep.subr.mxu0 0.0
    %v408 = vand.u32 %v27, 4294901760
    %v409 = vsub.f32 %v27, %v408
    %v410 = vand.u32 %v409, 4294901760
    %411 = vmatpush1.msra.mxu0 %v410
    %412 = vmatprep.subr.mxu0 0.0
    %v413 = vand.u32 %v28, 4294901760
    %v414 = vsub.f32 %v28, %v413
    %v415 = vand.u32 %v414, 4294901760
    %416 = vmatpush1.msra.mxu0 %v415
    %417 = vmatprep.subr.mxu0 0.0
    %v418 = vand.u32 %v29, 4294901760
    %v419 = vsub.f32 %v29, %v418
    %v420 = vand.u32 %v419, 4294901760
    %421 = vmatpush1.msra.mxu0 %v420
    %422 = vmatprep.subr.mxu0 0.0
    %423 = vmatpush1.msra.mxu0 0.0
    %424 = vmatprep.subr.mxu0 0.0
    %425 = vmatpush1.msra.mxu0 0.0
    %426 = vmatprep.subr.mxu0 0.0
    %427 = vmatpush1.msra.mxu0 0.0
    %428 = vmatprep.subr.mxu0 0.0
    %429 = vmatpush1.msra.mxu0 0.0
    %430 = vmatprep.subr.mxu0 0.0
    %431 = vmatpush1.msra.mxu0 0.0
    %432 = vmatprep.subr.mxu0 0.0
    %433 = vmatpush1.msra.mxu0 0.0
    %434 = vmatprep.subr.mxu0 0.0
    %435 = vmatpush1.msra.mxu0 0.0
    %436 = vmatprep.subr.mxu0 0.0
    %437 = vmatpush1.msra.mxu0 0.0
    %438 = vmatprep.subr.mxu0 0.0
    %439 = vmatpush1.msra.mxu0 0.0
    %440 = vmatprep.subr.mxu0 0.0
    %441 = vmatpush1.msra.mxu0 0.0
    %442 = vmatprep.subr.mxu0 0.0
    %443 = vmatpush1.msra.mxu0 0.0
    %444 = vmatprep.subr.mxu0 0.0
    %445 = vmatpush1.msra.mxu0 0.0
    %446 = vmatprep.subr.mxu0 0.0
    %447 = vmatpush1.msra.mxu0 0.0
    %448 = vmatprep.subr.mxu0 0.0
    %449 = vmatpush1.msra.mxu0 0.0
    %450 = vmatprep.subr.mxu0 0.0
    %451 = vmatpush1.msra.mxu0 0.0
    %452 = vmatprep.subr.mxu0 0.0
    %453 = vmatpush1.msra.mxu0 0.0
    %454 = vmatprep.subr.mxu0 0.0
    %455 = vmatpush1.msra.mxu0 0.0
    %456 = vmatprep.subr.mxu0 0.0
    %457 = vmatpush1.msra.mxu0 0.0
    %458 = vmatprep.subr.mxu0 0.0
    %459 = vmatpush1.msra.mxu0 0.0
    %460 = vmatprep.subr.mxu0 0.0
    %461 = vmatpush1.msra.mxu0 0.0
    %462 = vmatprep.subr.mxu0 0.0
    %463 = vmatpush1.msra.mxu0 0.0
    %464 = vmatprep.subr.mxu0 0.0
    %465 = vmatpush1.msra.mxu0 0.0
    %466 = vmatprep.subr.mxu0 0.0
    %467 = vmatpush1.msra.mxu0 0.0
    %468 = vmatprep.subr.mxu0 0.0
    %469 = vmatpush1.msra.mxu0 0.0
    %470 = vmatprep.subr.mxu0 0.0
    %471 = vmatpush1.msra.mxu0 0.0
    %472 = vmatprep.subr.mxu0 0.0
    %473 = vmatpush1.msra.mxu0 0.0
    %474 = vmatprep.subr.mxu0 0.0
    %475 = vmatpush1.msra.mxu0 0.0
    %476 = vmatprep.subr.mxu0 0.0
    %477 = vmatpush1.msra.mxu0 0.0
    %478 = vmatprep.mubr.f32.mxu0 0.0
    %v479 = vand.u32 %v39, 4294901760
    %480 = vmatmul.mubr.f32.gmra.mrb[0].mxu0 %v479
    %v481 = vpop.f32.mrb[0].mxu0
    %v482 = vadd.f32 %v391, %v481
    %v483 = vpop.f32.mrb[0].mxu0
    %484 = vmatprep.mubr.f32.mxu0 0.0
    %v485 = vand.u32 %v42, 4294901760
    %486 = vmatmul.mubr.f32.gmra.mrb[0].mxu0 %v485
    %v487 = vpop.f32.mrb[0].mxu0
    %v488 = vadd.f32 %v399, %v487
    %v489 = vpop.f32.mrb[0].mxu0
    %490 = vdwg.mxu0
    %491 = vmatprep.subr.mxu0 0.0
    %v492 = vand.u32 %v26, 4294901760
    %493 = vmatpush1.msra.mxu0 %v492
    %494 = vmatprep.subr.mxu0 0.0
    %v495 = vand.u32 %v27, 4294901760
    %496 = vmatpush1.msra.mxu0 %v495
    %497 = vmatprep.subr.mxu0 0.0
    %v498 = vand.u32 %v28, 4294901760
    %499 = vmatpush1.msra.mxu0 %v498
    %500 = vmatprep.subr.mxu0 0.0
    %v501 = vand.u32 %v29, 4294901760
    %502 = vmatpush1.msra.mxu0 %v501
    %503 = vmatprep.subr.mxu0 0.0
    %504 = vmatpush1.msra.mxu0 0.0
    %505 = vmatprep.subr.mxu0 0.0
    %506 = vmatpush1.msra.mxu0 0.0
    %507 = vmatprep.subr.mxu0 0.0
    %508 = vmatpush1.msra.mxu0 0.0
    %509 = vmatprep.subr.mxu0 0.0
    %510 = vmatpush1.msra.mxu0 0.0
    %511 = vmatprep.subr.mxu0 0.0
    %512 = vmatpush1.msra.mxu0 0.0
    %513 = vmatprep.subr.mxu0 0.0
    %514 = vmatpush1.msra.mxu0 0.0
    %515 = vmatprep.subr.mxu0 0.0
    %516 = vmatpush1.msra.mxu0 0.0
    %517 = vmatprep.subr.mxu0 0.0
    %518 = vmatpush1.msra.mxu0 0.0
    %519 = vmatprep.subr.mxu0 0.0
    %520 = vmatpush1.msra.mxu0 0.0
    %521 = vmatprep.subr.mxu0 0.0
    %522 = vmatpush1.msra.mxu0 0.0
    %523 = vmatprep.subr.mxu0 0.0
    %524 = vmatpush1.msra.mxu0 0.0
    %525 = vmatprep.subr.mxu0 0.0
    %526 = vmatpush1.msra.mxu0 0.0
    %527 = vmatprep.subr.mxu0 0.0
    %528 = vmatpush1.msra.mxu0 0.0
    %529 = vmatprep.subr.mxu0 0.0
    %530 = vmatpush1.msra.mxu0 0.0
    %531 = vmatprep.subr.mxu0 0.0
    %532 = vmatpush1.msra.mxu0 0.0
    %533 = vmatprep.subr.mxu0 0.0
    %534 = vmatpush1.msra.mxu0 0.0
    %535 = vmatprep.subr.mxu0 0.0
    %536 = vmatpush1.msra.mxu0 0.0
    %537 = vmatprep.subr.mxu0 0.0
    %538 = vmatpush1.msra.mxu0 0.0
    %539 = vmatprep.subr.mxu0 0.0
    %540 = vmatpush1.msra.mxu0 0.0
    %541 = vmatprep.subr.mxu0 0.0
    %542 = vmatpush1.msra.mxu0 0.0
    %543 = vmatprep.subr.mxu0 0.0
    %544 = vmatpush1.msra.mxu0 0.0
    %545 = vmatprep.subr.mxu0 0.0
    %546 = vmatpush1.msra.mxu0 0.0
    %547 = vmatprep.subr.mxu0 0.0
    %548 = vmatpush1.msra.mxu0 0.0
    %549 = vmatprep.subr.mxu0 0.0
    %550 = vmatpush1.msra.mxu0 0.0
    %551 = vmatprep.subr.mxu0 0.0
    %552 = vmatpush1.msra.mxu0 0.0
    %553 = vmatprep.subr.mxu0 0.0
    %554 = vmatpush1.msra.mxu0 0.0
    %555 = vmatprep.subr.mxu0 0.0
    %556 = vmatpush1.msra.mxu0 0.0
    %557 = vmatprep.subr.mxu0 0.0
    %558 = vmatpush1.msra.mxu0 0.0
    %559 = vmatprep.mubr.f32.mxu0 0.0
    %v560 = vand.u32 %v39, 4294901760
    %561 = vmatmul.mubr.f32.gmra.mrb[0].mxu0 %v560
    %v562 = vpop.f32.mrb[0].mxu0
    %v563 = vadd.f32 %v482, %v562
    %v564 = vpop.f32.mrb[0].mxu0
    %565 = vmatprep.mubr.f32.mxu0 0.0
    %v566 = vand.u32 %v42, 4294901760
    %567 = vmatmul.mubr.f32.gmra.mrb[0].mxu0 %v566
    %v568 = vpop.f32.mrb[0].mxu0
    %v569 = vadd.f32 %v488, %v568
    %v570 = vpop.f32.mrb[0].mxu0
    %571 = vdwg.mxu0
    %v572 = vtanh.pop %v563
    %v573 = vtanh.pop %v569
    %v574 = vld [vmem:[%s4] sm:$0x1]
    %v576 = vlaneseq
    %v577 = vshrl.u32 %v576, 7
    %v578 = vsub.s32 0, %v577
    %v579 = vrot.slane %v574, %v578
    %v581 = vmul.f32 %v572, %v579
    %v582 = vmul.f32 %v573, %v579
    %v583 = vsel %vm37, %v581, 0.0
    %584 = vadd.xlane.f32.xlu0 %v583
    %v585 = vpop.xlane.xlu0 %584
    %v586 = vsel %vm37, %v582, 0.0
    %587 = vadd.xlane.f32.xlu0 %v586
    %v588 = vpop.xlane.xlu0 %587
    %v589 = vld [vmem:[%s1] sm:$0x3]
    %v592 = vlaneseq
    %v593 = vand.u32 %v592, 127
    %v594 = vlaneseq
    %v595 = vshrl.u32 %v594, 7
    %v596 = vsub.s32 %v593, %v595
    %v597 = vrot.slane %v585, %v596
    %v598 = vlaneseq
    %v599 = vshrl.u32 %v598, 7
    %v600 = vsub.s32 %v593, %v599
    %v601 = vrot.slane %v588, %v600
    %vm602 = vcmask 1041409
    %v603 = vsel %vm602, %v601, %v597
    %vm605 = vcmask 58368
    %v606 = vsel %vm605, %v603, -inf
    %607 = vmax.xlane.f32.xlu0 %v606
    %v608 = vpop.xlane.xlu0 %607
    %v610 = vlaneseq
    %v611 = vshrl.u32 %v610, 7
    %v612 = vsub.s32 0, %v611
    %v613 = vrot.slane %v608, %v612
    %v614 = vlaneseq
    %v615 = vshrl.u32 %v614, 7
    %v616 = vsub.s32 1, %v615
    %v617 = vrot.slane %v608, %v616
    %v620 = vsub.f32 %v585, %v613
    %v621 = vsub.f32 %v588, %v617
    %v622 = vmul.f32 %v620, 1.442695
    %v623 = vpow.pop %v622
    %v624 = vmul.f32 %v621, 1.442695
    %v625 = vpow.pop %v624
    %v627 = vlaneseq
    %v628 = vshrl.u32 %v627, 7
    %v629 = vsub.s32 0, %v628
    %v630 = vrot.slane %v589, %v629
    %632 = vbcast.lane.b32.xlu0 %v630, 256
    %v633 = vpop.permute.xlu0 %632
    %v634 = vlaneseq
    %v635 = vshrl.u32 %v634, 7
    %v636 = vsub.s32 1, %v635
    %v637 = vrot.slane %v589, %v636
    %639 = vbcast.lane.b32.xlu0 %v637, 256
    %v640 = vpop.permute.xlu0 %639
    %v643 = vmul.f32 %v623, %v633
    %v644 = vmul.f32 %v625, %v640
    %647 = vset.pattern.permute.xlu0 0
    %648 = vperm.xlu0 %647, %v643
    %v649 = vpop.permute.xlu0 %648
    %650 = vset.pattern.permute.xlu0 0
    %651 = vperm.xlu0 %650, %v644
    %v652 = vpop.permute.xlu0 %651
    %v653 = vlaneseq
    %v654 = vshrl.u32 %v653, 7
    %v655 = vsub.s32 %v593, %v654
    %v656 = vrot.slane %v649, %v655
    %v657 = vlaneseq
    %v658 = vshrl.u32 %v657, 7
    %v659 = vsub.s32 %v593, %v658
    %v660 = vrot.slane %v652, %v659
    %v661 = vsel %vm602, %v660, %v656
    %v663 = vsel %vm605, %v661, 0.0
    %664 = vadd.xlane.f32.xlu0 %v663
    %v665 = vpop.xlane.xlu0 %664
    %v666 = vrcp.pop %v665
    %v667 = vmul.f32 1.0, %v666
    %v669 = vlaneseq
    %v670 = vshrl.u32 %v669, 7
    %v671 = vsub.s32 0, %v670
    %v672 = vrot.slane %v667, %v671
    %v673 = vlaneseq
    %v674 = vshrl.u32 %v673, 7
    %v675 = vsub.s32 1, %v674
    %v676 = vrot.slane %v667, %v675
    %v679 = vmul.f32 %v643, %v672
    %v680 = vmul.f32 %v644, %v676
    %683 = vset.pattern.permute.xlu0 0
    %684 = vperm.xlu0 %683, %v679
    %v685 = vpop.permute.xlu0 %684
    %686 = vset.pattern.permute.xlu0 0
    %687 = vperm.xlu0 %686, %v680
    %v688 = vpop.permute.xlu0 %687
    %v689 = vlaneseq
    %v690 = vshrl.u32 %v689, 7
    %v691 = vsub.s32 %v593, %v690
    %v692 = vrot.slane %v685, %v691
    %v693 = vlaneseq
    %v694 = vshrl.u32 %v693, 7
    %v695 = vsub.s32 %v593, %v694
    %v696 = vrot.slane %v688, %v695
    %v697 = vsel %vm602, %v696, %v692
    %699 = vst.msk [vmem:[#allocation4] sm:$0x3] %vm605, %v697
    %v702 = vmul.f32 %v24, %v685
    %v703 = vmul.f32 %v25, %v688
    %704 = vst.msk [vmem:[#allocation2] sm:$0xff] %vm37, %v702
    %705 = vst.msk [vmem:[#allocation2 + $0x8] sm:$0xff] %vm37, %v703
    // Predicated region
    $region22: #{attention_forward.1} parent=1 // pred_check
      _
    $region23: #{attention_forward.1} parent=1 // pred_check_branch
      %707 = sbr.rel (0) target = $region25
    $region24: #{attention_forward.1} parent=1 // pred_region
      %s709 = ssub.s32 256, 256
      %710 = vsyncadd [#allocation3], %s709
      %s711 = sshll.u32 [#allocation2], 4
      %s712 = int_to_ptr.vmem [resolvable:$true] %s711
      %717 = dma.vmem_to_hbm [thread:$0]  %s712, 256, %s5, [#allocation3], 128, 128, 8
    $region25: #{attention_forward.1} parent=1 // pred_fallthru
      _
    // Predicated region
    $region26: #{attention_forward.1} parent=1 // pred_check
      _
    $region27: #{attention_forward.1} parent=1 // pred_check_branch
      %719 = sbr.rel (0) target = $region29
    $region28: #{attention_forward.1} parent=1 // pred_region
      %s721 = ssub.s32 32, 32
      %722 = vsyncadd [#allocation5], %s721
      %s724 = sshll.u32 [#allocation4], 4
      %s725 = int_to_ptr.vmem [resolvable:$true] %s724
      %727 = dma.vmem_to_hbm [thread:$0]  %s725, 32, %s6, [#allocation5]
    $region29: #{attention_forward.1} parent=1 // pred_fallthru
      _
    // Predicated region
    $region30: #{attention_forward.1} parent=1 // pred_check
      _
    $region31: #{attention_forward.1} parent=1 // pred_check_branch
      %729 = sbr.rel (0) target = $region33
    $region32: #{attention_forward.1} parent=1 // pred_region
      %730 = dma.done [#allocation3], 256
    $region33: #{attention_forward.1} parent=1 // pred_fallthru
      _
    // Predicated region
    $region34: #{attention_forward.1} parent=1 // pred_check
      _
    $region35: #{attention_forward.1} parent=1 // pred_check_branch
      %732 = sbr.rel (0) target = $region37
    $region36: #{attention_forward.1} parent=1 // pred_region
      %733 = dma.done [#allocation5], 32
    $region37: #{attention_forward.1} parent=1 // pred_fallthru
      _
    %734 = vsyncpa [#allocation3], 1
    %735 = vsyncpa [#allocation5], 1

</llo_original>
